<compile_context>
chip_gen: v7x
topology: tpu7x:2x2x1
jax: 0.10.0
libtpu: 0.0.40
codegen_flags: <defaults>
</compile_context>

<pallas_src>
import jax
import jax.numpy as jnp
from jax import lax
from jax.experimental import pallas as pl
from jax.experimental.pallas import tpu as pltpu

H1, H2, OUT = 16, 32, 1


def critic_kernel(x_ref, w1_ref, b1_ref, w2_ref, b2_ref, w3_ref, b3_ref, out_ref):
    # x is batch-major (TILE_B, S) exactly as produced by the caller; weights
    # are PyTorch-oriented (out, in) and biases are (out, 1), so
    # h = relu(W @ x^T + b) reproduces nn.Linear exactly (transposed).
    x = x_ref[...]                                                       # (TB, S)

    # Layer 1: W1 (16, S) contracted against x (TB, S) on the last axis of both
    # -> (16, TB).  Same pattern as attention scores q @ k^T; K=S is tiny.
    h1 = lax.dot_general(w1_ref[...], x, (((1,), (1,)), ((), ())),
                         preferred_element_type=jnp.float32)             # (16, TB)
    h1 = jnp.maximum(h1 + b1_ref[...], 0.0)

    h2 = jnp.dot(w2_ref[...], h1, preferred_element_type=jnp.float32)    # (32, TB)
    h2 = jnp.maximum(h2 + b2_ref[...], 0.0)

    v = jnp.dot(w3_ref[...], h2, preferred_element_type=jnp.float32)     # (1, TB)
    out_ref[...] = (v + b3_ref[...]).astype(out_ref.dtype)               # lane-dense store


def critic_forward(state, params, tile_b=16384):
    """state: (B, state_size) f32  ->  (B, 1) f32 (same as PyTorch Critic.forward)."""
    B, S = state.shape
    w1, b1 = params["w1"], params["b1"]   # (16, S), (16, 1)
    w2, b2 = params["w2"], params["b2"]   # (32, 16), (32, 1)
    w3, b3 = params["w3"], params["b3"]   # (1, 32),  (1, 1)

    # Batch rides the lane axis downstream, so tile_b is a multiple of 128.
    # Cap at 16384: worst-case VMEM ~= 2*512*tile_b (lane-padded x, double-
    # buffered) + 2*32*tile_b (out) + ~224*tile_b (live activations) ~= 21 MiB,
    # comfortably under the 32 MiB limit requested below on every generation.
    tile_b = max(128, (int(tile_b) // 128) * 128)
    tile_b = min(tile_b, 16384)
    if B <= tile_b:
        tile_b = B                      # single full-extent block (always layout-legal)
    grid = pl.cdiv(B, tile_b)           # ragged last block: OOB columns are junk,
                                        # per-column independent, never read back

    resident = lambda i: (0, 0)         # weights/biases stay VMEM-resident

    flops = 2 * B * (S * H1 + H1 * H2 + H2 * OUT)
    bytes_accessed = 4 * (B * S + B * OUT + w1.size + w2.size + w3.size
                          + b1.size + b2.size + b3.size)

    out = pl.pallas_call(
        critic_kernel,
        out_shape=jax.ShapeDtypeStruct((OUT, B), jnp.float32),
        grid=(grid,),
        in_specs=[
            pl.BlockSpec((tile_b, S), lambda i: (i, 0)),   # state tile (pipelined)
            pl.BlockSpec((H1, S), resident),
            pl.BlockSpec((H1, 1), resident),
            pl.BlockSpec((H2, H1), resident),
            pl.BlockSpec((H2, 1), resident),
            pl.BlockSpec((OUT, H2), resident),
            pl.BlockSpec((OUT, 1), resident),
        ],
        out_specs=pl.BlockSpec((OUT, tile_b), lambda i: (0, i)),
        compiler_params=pltpu.CompilerParams(
            dimension_semantics=("parallel",),      # batch tiles shard across TCs on v7x
            vmem_limit_bytes=32 * 1024 * 1024,      # >= default scope on all gens, <= v7x phys
        ),
        cost_estimate=pl.CostEstimate(
            flops=flops, transcendentals=0, bytes_accessed=bytes_accessed),
    )(state, w1, b1, w2, b2, w3, b3)

    # (1, B) lane-dense kernel output -> (B, 1).  For a (1, B) array this
    # transpose is just a reshape (free / bitcast), not an extra HBM pass.
    return out.reshape(B, 1)


def init_critic_params(key, state_size, action_size):
    """Mirrors nn.Linear default init: U(-1/sqrt(fan_in), +1/sqrt(fan_in))."""
    del action_size  # unused by the Critic forward pass
    ks = jax.random.split(key, 6)

    def linear(kw, kb, fan_in, fan_out):
        bound = 1.0 / jnp.sqrt(jnp.float32(fan_in))
        w = jax.random.uniform(kw, (fan_out, fan_in), jnp.float32, -bound, bound)
        b = jax.random.uniform(kb, (fan_out, 1), jnp.float32, -bound, bound)
        return w, b

    w1, b1 = linear(ks[0], ks[1], state_size, H1)
    w2, b2 = linear(ks[2], ks[3], H1, H2)
    w3, b3 = linear(ks[4], ks[5], H2, OUT)
    return {"w1": w1, "b1": b1, "w2": w2, "b2": b2, "w3": w3, "b3": b3}


if __name__ == "__main__":
    key = jax.random.PRNGKey(0)
    k_param, k_state, k_state2 = jax.random.split(key, 3)

    state_size = 4    # CartPole-like observation
    action_size = 2
    batch = 8

    params = init_critic_params(k_param, state_size, action_size)

    def reference(s):
        # Pure-JAX reference (same math as the PyTorch forward).
        h1 = jnp.maximum(s @ params["w1"].T + params["b1"].T, 0.0)
        h2 = jnp.maximum(h1 @ params["w2"].T + params["b2"].T, 0.0)
        return h2 @ params["w3"].T + params["b3"].T

    # Small PyTorch-like batch (single-block path).
    state = jax.random.normal(k_state, (batch, state_size), jnp.float32)
    value = jax.block_until_ready(critic_forward(state, params))
    assert value.shape == (batch, 1)
    assert jnp.allclose(value, reference(state), atol=1e-5, rtol=1e-5)

    # Multi-tile path with a ragged last block (exercises masked OOB handling).
    state2 = jax.random.normal(k_state2, (200, state_size), jnp.float32)
    value2 = jax.block_until_ready(critic_forward(state2, params, tile_b=128))
    assert value2.shape == (200, 1)
    assert jnp.allclose(value2, reference(state2), atol=1e-5, rtol=1e-5)

    print("KERNEL_OK")
</pallas_src>

<mosaic_0001>
module attributes {stable_mosaic.version = 11 : i64} {
  func.func @critic_kernel(%arg0: i32, %arg1: memref<8x4xf32, #tpu.memory_space<vmem>>, %arg2: memref<16x4xf32, #tpu.memory_space<vmem>>, %arg3: memref<16x1xf32, #tpu.memory_space<vmem>>, %arg4: memref<32x16xf32, #tpu.memory_space<vmem>>, %arg5: memref<32x1xf32, #tpu.memory_space<vmem>>, %arg6: memref<1x32xf32, #tpu.memory_space<vmem>>, %arg7: memref<1x1xf32, #tpu.memory_space<vmem>>, %arg8: memref<1x8xf32, #tpu.memory_space<vmem>>) attributes {dimension_semantics = [#tpu.dimension_semantics<parallel>], iteration_bounds = array<i64: 1>, scalar_prefetch = 0 : i64, scratch_operands = 0 : i64, tpu.core_type = #tpu.core_type<tc>, window_params = [{transform_indices = @transform_0, window_bounds = array<i64: 8, 4>}, {pipeline_mode = #tpu.pipeline_mode<synchronous>, transform_indices = @transform_1, window_bounds = array<i64: 16, 4>}, {pipeline_mode = #tpu.pipeline_mode<synchronous>, transform_indices = @transform_2, window_bounds = array<i64: 16, 1>}, {pipeline_mode = #tpu.pipeline_mode<synchronous>, transform_indices = @transform_3, window_bounds = array<i64: 32, 16>}, {pipeline_mode = #tpu.pipeline_mode<synchronous>, transform_indices = @transform_4, window_bounds = array<i64: 32, 1>}, {pipeline_mode = #tpu.pipeline_mode<synchronous>, transform_indices = @transform_5, window_bounds = array<i64: 1, 32>}, {pipeline_mode = #tpu.pipeline_mode<synchronous>, transform_indices = @transform_6, window_bounds = array<i64: 1, 1>}, {transform_indices = @transform_7, window_bounds = array<i64: 1, 8>}]} {
    %c0 = arith.constant 0 : index
    %c0_0 = arith.constant 0 : index
    %0 = vector.load %arg1[%c0, %c0_0] : memref<8x4xf32, #tpu.memory_space<vmem>>, vector<8x4xf32>
    %c0_1 = arith.constant 0 : index
    %c0_2 = arith.constant 0 : index
    %1 = vector.load %arg2[%c0_1, %c0_2] : memref<16x4xf32, #tpu.memory_space<vmem>>, vector<16x4xf32>
    %cst = arith.constant dense<0.000000e+00> : vector<16x8xf32>
    %2 = tpu.matmul %1, %0, %cst {dimension_numbers = #tpu.dot_dimension_numbers<[1], [1], [0], [0], [0, 0, 1, 0], [], []>} : vector<16x4xf32>, vector<8x4xf32>, vector<16x8xf32> -> vector<16x8xf32>
    %c0_3 = arith.constant 0 : index
    %c0_4 = arith.constant 0 : index
    %3 = vector.load %arg3[%c0_3, %c0_4] : memref<16x1xf32, #tpu.memory_space<vmem>>, vector<16x1xf32>
    %4 = vector.broadcast %3 : vector<16x1xf32> to vector<16x8xf32>
    %5 = arith.addf %2, %4 : vector<16x8xf32>
    %cst_5 = arith.constant 0.000000e+00 : f32
    %6 = vector.broadcast %cst_5 : f32 to vector<16x8xf32>
    %7 = arith.maximumf %5, %6 : vector<16x8xf32>
    %c0_6 = arith.constant 0 : index
    %c0_7 = arith.constant 0 : index
    %8 = vector.load %arg4[%c0_6, %c0_7] : memref<32x16xf32, #tpu.memory_space<vmem>>, vector<32x16xf32>
    %cst_8 = arith.constant dense<0.000000e+00> : vector<32x8xf32>
    %9 = tpu.matmul %8, %7, %cst_8 {dimension_numbers = #tpu.dot_dimension_numbers<[1], [0], [0], [1], [0, 0, 1, 1], [], []>} : vector<32x16xf32>, vector<16x8xf32>, vector<32x8xf32> -> vector<32x8xf32>
    %c0_9 = arith.constant 0 : index
    %c0_10 = arith.constant 0 : index
    %10 = vector.load %arg5[%c0_9, %c0_10] : memref<32x1xf32, #tpu.memory_space<vmem>>, vector<32x1xf32>
    %11 = vector.broadcast %10 : vector<32x1xf32> to vector<32x8xf32>
    %12 = arith.addf %9, %11 : vector<32x8xf32>
    %cst_11 = arith.constant 0.000000e+00 : f32
    %13 = vector.broadcast %cst_11 : f32 to vector<32x8xf32>
    %14 = arith.maximumf %12, %13 : vector<32x8xf32>
    %c0_12 = arith.constant 0 : index
    %c0_13 = arith.constant 0 : index
    %15 = vector.load %arg6[%c0_12, %c0_13] : memref<1x32xf32, #tpu.memory_space<vmem>>, vector<1x32xf32>
    %cst_14 = arith.constant dense<0.000000e+00> : vector<1x8xf32>
    %16 = tpu.matmul %15, %14, %cst_14 {dimension_numbers = #tpu.dot_dimension_numbers<[1], [0], [0], [1], [0, 0, 1, 1], [], []>} : vector<1x32xf32>, vector<32x8xf32>, vector<1x8xf32> -> vector<1x8xf32>
    %c0_15 = arith.constant 0 : index
    %c0_16 = arith.constant 0 : index
    %17 = vector.load %arg7[%c0_15, %c0_16] : memref<1x1xf32, #tpu.memory_space<vmem>>, vector<1x1xf32>
    %18 = vector.broadcast %17 : vector<1x1xf32> to vector<1x8xf32>
    %19 = arith.addf %16, %18 : vector<1x8xf32>
    %c0_17 = arith.constant 0 : index
    %c0_18 = arith.constant 0 : index
    %20 = vector.load %arg8[%c0_17, %c0_18] : memref<1x8xf32, #tpu.memory_space<vmem>>, vector<1x8xf32>
    tpu.vector_store %arg8[%c0_17, %c0_18], %19 {strides = array<i32>} : memref<1x8xf32, #tpu.memory_space<vmem>>, vector<1x8xf32>,
    return
  }
  func.func @transform_0(%arg0: i32) -> (i32, i32) {
    %c0_i32 = arith.constant 0 : i32
    %c0_i32_0 = arith.constant 0 : i32
    return %arg0, %c0_i32 : i32, i32
  }
  func.func @transform_1(%arg0: i32) -> (i32, i32) {
    %c0_i32 = arith.constant 0 : i32
    %c0_i32_0 = arith.constant 0 : i32
    %c0_i32_1 = arith.constant 0 : i32
    return %c0_i32, %c0_i32_0 : i32, i32
  }
  func.func @transform_2(%arg0: i32) -> (i32, i32) {
    %c0_i32 = arith.constant 0 : i32
    %c0_i32_0 = arith.constant 0 : i32
    %c0_i32_1 = arith.constant 0 : i32
    return %c0_i32, %c0_i32_0 : i32, i32
  }
  func.func @transform_3(%arg0: i32) -> (i32, i32) {
    %c0_i32 = arith.constant 0 : i32
    %c0_i32_0 = arith.constant 0 : i32
    %c0_i32_1 = arith.constant 0 : i32
    return %c0_i32, %c0_i32_0 : i32, i32
  }
  func.func @transform_4(%arg0: i32) -> (i32, i32) {
    %c0_i32 = arith.constant 0 : i32
    %c0_i32_0 = arith.constant 0 : i32
    %c0_i32_1 = arith.constant 0 : i32
    return %c0_i32, %c0_i32_0 : i32, i32
  }
  func.func @transform_5(%arg0: i32) -> (i32, i32) {
    %c0_i32 = arith.constant 0 : i32
    %c0_i32_0 = arith.constant 0 : i32
    %c0_i32_1 = arith.constant 0 : i32
    return %c0_i32, %c0_i32_0 : i32, i32
  }
  func.func @transform_6(%arg0: i32) -> (i32, i32) {
    %c0_i32 = arith.constant 0 : i32
    %c0_i32_0 = arith.constant 0 : i32
    %c0_i32_1 = arith.constant 0 : i32
    return %c0_i32, %c0_i32_0 : i32, i32
  }
  func.func @transform_7(%arg0: i32) -> (i32, i32) {
    %c0_i32 = arith.constant 0 : i32
    %c0_i32_0 = arith.constant 0 : i32
    return %c0_i32, %arg0 : i32, i32
  }
}

</mosaic_0001>

<llo_original>
// kernel: tpu_custom_call.1
$region0: #{tpu_custom_call.1}
  #allocation0 [shape = 'u32[]', space=smem, size = 0x4, offset = 0x4, fixed_abs, tag = 'smem constant byte address 0x4 - core index']
  #allocation1 [shape = 'u32[144,128]{1,0:T(1,128)}', space=vmem, size = 0x12000, scoped, tag = 'internal scratch']
  #allocation2 [shape = 'f32[1,1]{1,0:T(1,128)S(1)}', space=vmem, size = 0x200, scoped, tag = 'scoped memory for tpu_custom_call.1']
  %s0 = inlined_call_operand.vmem [shape: f32[8,4], index: 0, kind: input, shape index: {}]
  %s1 = inlined_call_operand.vmem [shape: f32[16,4], index: 1, kind: input, shape index: {}]
  %s2 = inlined_call_operand.vmem [shape: f32[16,1], index: 2, kind: input, shape index: {}]
  %s3 = inlined_call_operand.vmem [shape: f32[32,16], index: 3, kind: input, shape index: {}]
  %s4 = inlined_call_operand.vmem [shape: f32[32,1], index: 4, kind: input, shape index: {}]
  %s5 = inlined_call_operand.vmem [shape: f32[1,32], index: 5, kind: input, shape index: {}]
  %s6 = inlined_call_operand.<no memory space> [shape: f32[1,1], index: 6, kind: input, shape index: {}]
  %s7 = inlined_call_operand.hbm [shape: f32[1,8], index: 7, kind: output, shape index: {}]
  %s8 = sld [smem:[#allocation0]]
  $region38: #{tpu_custom_call.1} parent=0
    _
  %s10 = ssub.s32 1, %s8
  %s11 = scalar_select 0, %s10, %s8
  %v12 = vstv %s6
  %13 = vst [vmem:[#allocation2] sm:$0x1] %v12
  $region1: #{tpu_custom_call.1} parent=0
    #allocation3 [shape = 'u8[512]{0}', space=vmem, size = 0x400, scoped, tag = 'output window, operand 0, single buffered']
    #allocation4 [shape = 's32[1]{0}', space=sflag, size = 0x4, scoped, tag = 'scoped memory for tpu_custom_call.1']
    %14 = vsyncpa [#allocation4], 0
    // Predicated region
    $region2: #{tpu_custom_call.1} parent=1 // pred_check
      _
    $region3: #{tpu_custom_call.1} parent=1 // pred_check_branch
      %16 = sbr.rel (0) target = $region5
    $region4: #{tpu_custom_call.1} parent=1 // pred_region
      _
    $region5: #{tpu_custom_call.1} parent=1 // pred_fallthru
      _
    // Predicated region
    $region6: #{tpu_custom_call.1} parent=1 // pred_check
      _
    $region7: #{tpu_custom_call.1} parent=1 // pred_check_branch
      %18 = sbr.rel (0) target = $region9
    $region8: #{tpu_custom_call.1} parent=1 // pred_region
      _
    $region9: #{tpu_custom_call.1} parent=1 // pred_fallthru
      _
    // Predicated region
    $region10: #{tpu_custom_call.1} parent=1 // pred_check
      _
    $region11: #{tpu_custom_call.1} parent=1 // pred_check_branch
      %20 = sbr.rel (0) target = $region13
    $region12: #{tpu_custom_call.1} parent=1 // pred_region
      _
    $region13: #{tpu_custom_call.1} parent=1 // pred_fallthru
      _
    // Predicated region
    $region14: #{tpu_custom_call.1} parent=1 // pred_check
      _
    $region15: #{tpu_custom_call.1} parent=1 // pred_check_branch
      %22 = sbr.rel (0) target = $region17
    $region16: #{tpu_custom_call.1} parent=1 // pred_region
      _
    $region17: #{tpu_custom_call.1} parent=1 // pred_fallthru
      _
    // Predicated region
    $region18: #{tpu_custom_call.1} parent=1 // pred_check
      _
    $region19: #{tpu_custom_call.1} parent=1 // pred_check_branch
      %24 = sbr.rel (0) target = $region21
    $region20: #{tpu_custom_call.1} parent=1 // pred_region
      _
    $region21: #{tpu_custom_call.1} parent=1 // pred_fallthru
      _
    // Predicated region
    $region22: #{tpu_custom_call.1} parent=1 // pred_check
      _
    $region23: #{tpu_custom_call.1} parent=1 // pred_check_branch
      %26 = sbr.rel (0) target = $region25
    $region24: #{tpu_custom_call.1} parent=1 // pred_region
      _
    $region25: #{tpu_custom_call.1} parent=1 // pred_fallthru
      _
    // Predicated region
    $region26: #{tpu_custom_call.1} parent=1 // pred_check
      _
    $region27: #{tpu_custom_call.1} parent=1 // pred_check_branch
      %28 = sbr.rel (0) target = $region29
    $region28: #{tpu_custom_call.1} parent=1 // pred_region
      _
    $region29: #{tpu_custom_call.1} parent=1 // pred_fallthru
      _
    %v29 = vld [vmem:[%s0] sm:$0xff]
    %v30 = vld [vmem:[%s1] sm:$0xff]
    %v31 = vld [vmem:[%s1 + $0x8] sm:$0xff]
    %v32 = vld [vmem:[%s2] sm:$0xff]
    %v33 = vld [vmem:[%s2 + $0x8] sm:$0xff]
    %35 = vset.pattern.permute.xlu0 0
    %36 = vperm.xlu0 %35, %v32
    %v37 = vpop.permute.xlu0 %36
    %40 = vset.pattern.permute.xlu0 0
    %41 = vperm.xlu0 %40, %v33
    %v42 = vpop.permute.xlu0 %41
    %vm44 = vcmask 31744
    %v46 = vsel %vm44, %v30, 0
    %v49 = vsel %vm44, %v31, 0
    %v52 = vsel %vm44, %v29, 0
    %54 = vmatprep.subr.mxu0 0.0
    %55 = vmatpush1.xpose.msra.mxu0 %v52
    %56 = vmatprep.subr.mxu0 0.0
    %57 = vmatpush1.xpose.msra.mxu0 0.0
    %58 = vmatprep.subr.mxu0 0.0
    %59 = vmatpush1.xpose.msra.mxu0 0.0
    %60 = vmatprep.subr.mxu0 0.0
    %61 = vmatpush1.xpose.msra.mxu0 0.0
    %62 = vmatprep.subr.mxu0 0.0
    %63 = vmatpush1.xpose.msra.mxu0 0.0
    %64 = vmatprep.subr.mxu0 0.0
    %65 = vmatpush1.xpose.msra.mxu0 0.0
    %66 = vmatprep.subr.mxu0 0.0
    %67 = vmatpush1.xpose.msra.mxu0 0.0
    %68 = vmatprep.subr.mxu0 0.0
    %69 = vmatpush1.xpose.msra.mxu0 0.0
    %70 = vmatprep.subr.mxu0 0.0
    %71 = vmatpush1.xpose.msra.mxu0 0.0
    %72 = vmatprep.subr.mxu0 0.0
    %73 = vmatpush1.xpose.msra.mxu0 0.0
    %74 = vmatprep.subr.mxu0 0.0
    %75 = vmatpush1.xpose.msra.mxu0 0.0
    %76 = vmatprep.subr.mxu0 0.0
    %77 = vmatpush1.xpose.msra.mxu0 0.0
    %78 = vmatprep.subr.mxu0 0.0
    %79 = vmatpush1.xpose.msra.mxu0 0.0
    %80 = vmatprep.subr.mxu0 0.0
    %81 = vmatpush1.xpose.msra.mxu0 0.0
    %82 = vmatprep.subr.mxu0 0.0
    %83 = vmatpush1.xpose.msra.mxu0 0.0
    %84 = vmatprep.subr.mxu0 0.0
    %85 = vmatpush1.xpose.msra.mxu0 0.0
    %86 = vmatprep.subr.mxu0 0.0
    %87 = vmatpush1.xpose.msra.mxu0 0.0
    %88 = vmatprep.subr.mxu0 0.0
    %89 = vmatpush1.xpose.msra.mxu0 0.0
    %90 = vmatprep.subr.mxu0 0.0
    %91 = vmatpush1.xpose.msra.mxu0 0.0
    %92 = vmatprep.subr.mxu0 0.0
    %93 = vmatpush1.xpose.msra.mxu0 0.0
    %94 = vmatprep.subr.mxu0 0.0
    %95 = vmatpush1.xpose.msra.mxu0 0.0
    %96 = vmatprep.subr.mxu0 0.0
    %97 = vmatpush1.xpose.msra.mxu0 0.0
    %98 = vmatprep.subr.mxu0 0.0
    %99 = vmatpush1.xpose.msra.mxu0 0.0
    %100 = vmatprep.subr.mxu0 0.0
    %101 = vmatpush1.xpose.msra.mxu0 0.0
    %102 = vmatprep.subr.mxu0 0.0
    %103 = vmatpush1.xpose.msra.mxu0 0.0
    %104 = vmatprep.subr.mxu0 0.0
    %105 = vmatpush1.xpose.msra.mxu0 0.0
    %106 = vmatprep.subr.mxu0 0.0
    %107 = vmatpush1.xpose.msra.mxu0 0.0
    %108 = vmatprep.subr.mxu0 0.0
    %109 = vmatpush1.xpose.msra.mxu0 0.0
    %110 = vmatprep.subr.mxu0 0.0
    %111 = vmatpush1.xpose.msra.mxu0 0.0
    %112 = vmatprep.subr.mxu0 0.0
    %113 = vmatpush1.xpose.msra.mxu0 0.0
    %114 = vmatprep.subr.mxu0 0.0
    %115 = vmatpush1.xpose.msra.mxu0 0.0
    %116 = vmatprep.subr.mxu0 0.0
    %117 = vmatpush1.xpose.msra.mxu0 0.0
    %118 = vmatprep.mubr.f32.mxu0 0.0
    %119 = vmatmul.mubr.f32.gmra.mrb[0].mxu0 %v46
    %v120 = vpop.f32.mrb[0].mxu0
    %v121 = vadd.f32 %v37, %v120
    %v122 = vpop.f32.mrb[0].mxu0
    %123 = vmatprep.mubr.f32.mxu0 0.0
    %124 = vmatmul.mubr.f32.gmra.mrb[0].mxu0 %v49
    %v125 = vpop.f32.mrb[0].mxu0
    %v126 = vadd.f32 %v42, %v125
    %v127 = vpop.f32.mrb[0].mxu0
    %128 = vdwg.mxu0
    %v129 = vmax.f32 %v121, 0.0
    %v130 = vmax.f32 %v126, 0.0
    %v131 = vld [vmem:[%s3] sm:$0xff]
    %v132 = vld [vmem:[%s3 + $0x8] sm:$0xff]
    %v133 = vld [vmem:[%s3 + $0x10] sm:$0xff]
    %v134 = vld [vmem:[%s3 + $0x18] sm:$0xff]
    %v135 = vld [vmem:[%s4] sm:$0xff]
    %v136 = vld [vmem:[%s4 + $0x8] sm:$0xff]
    %v137 = vld [vmem:[%s4 + $0x10] sm:$0xff]
    %v138 = vld [vmem:[%s4 + $0x18] sm:$0xff]
    %140 = vset.pattern.permute.xlu0 0
    %141 = vperm.xlu0 %140, %v135
    %v142 = vpop.permute.xlu0 %141
    %145 = vset.pattern.permute.xlu0 0
    %146 = vperm.xlu0 %145, %v136
    %v147 = vpop.permute.xlu0 %146
    %150 = vset.pattern.permute.xlu0 0
    %151 = vperm.xlu0 %150, %v137
    %v152 = vpop.permute.xlu0 %151
    %155 = vset.pattern.permute.xlu0 0
    %156 = vperm.xlu0 %155, %v138
    %v157 = vpop.permute.xlu0 %156
    %vm159 = vcmask 130048
    %v161 = vsel %vm159, %v131, 0
    %v164 = vsel %vm159, %v132, 0
    %v167 = vsel %vm159, %v133, 0
    %v170 = vsel %vm159, %v134, 0
    %172 = vmatprep.subr.mxu0 0.0
    %173 = vmatpush1.msra.mxu0 %v129
    %174 = vmatprep.subr.mxu0 0.0
    %175 = vmatpush1.msra.mxu0 %v130
    %176 = vmatprep.subr.mxu0 0.0
    %177 = vmatpush1.msra.mxu0 0.0
    %178 = vmatprep.subr.mxu0 0.0
    %179 = vmatpush1.msra.mxu0 0.0
    %180 = vmatprep.subr.mxu0 0.0
    %181 = vmatpush1.msra.mxu0 0.0
    %182 = vmatprep.subr.mxu0 0.0
    %183 = vmatpush1.msra.mxu0 0.0
    %184 = vmatprep.subr.mxu0 0.0
    %185 = vmatpush1.msra.mxu0 0.0
    %186 = vmatprep.subr.mxu0 0.0
    %187 = vmatpush1.msra.mxu0 0.0
    %188 = vmatprep.subr.mxu0 0.0
    %189 = vmatpush1.msra.mxu0 0.0
    %190 = vmatprep.subr.mxu0 0.0
    %191 = vmatpush1.msra.mxu0 0.0
    %192 = vmatprep.subr.mxu0 0.0
    %193 = vmatpush1.msra.mxu0 0.0
    %194 = vmatprep.subr.mxu0 0.0
    %195 = vmatpush1.msra.mxu0 0.0
    %196 = vmatprep.subr.mxu0 0.0
    %197 = vmatpush1.msra.mxu0 0.0
    %198 = vmatprep.subr.mxu0 0.0
    %199 = vmatpush1.msra.mxu0 0.0
    %200 = vmatprep.subr.mxu0 0.0
    %201 = vmatpush1.msra.mxu0 0.0
    %202 = vmatprep.subr.mxu0 0.0
    %203 = vmatpush1.msra.mxu0 0.0
    %204 = vmatprep.subr.mxu0 0.0
    %205 = vmatpush1.msra.mxu0 0.0
    %206 = vmatprep.subr.mxu0 0.0
    %207 = vmatpush1.msra.mxu0 0.0
    %208 = vmatprep.subr.mxu0 0.0
    %209 = vmatpush1.msra.mxu0 0.0
    %210 = vmatprep.subr.mxu0 0.0
    %211 = vmatpush1.msra.mxu0 0.0
    %212 = vmatprep.subr.mxu0 0.0
    %213 = vmatpush1.msra.mxu0 0.0
    %214 = vmatprep.subr.mxu0 0.0
    %215 = vmatpush1.msra.mxu0 0.0
    %216 = vmatprep.subr.mxu0 0.0
    %217 = vmatpush1.msra.mxu0 0.0
    %218 = vmatprep.subr.mxu0 0.0
    %219 = vmatpush1.msra.mxu0 0.0
    %220 = vmatprep.subr.mxu0 0.0
    %221 = vmatpush1.msra.mxu0 0.0
    %222 = vmatprep.subr.mxu0 0.0
    %223 = vmatpush1.msra.mxu0 0.0
    %224 = vmatprep.subr.mxu0 0.0
    %225 = vmatpush1.msra.mxu0 0.0
    %226 = vmatprep.subr.mxu0 0.0
    %227 = vmatpush1.msra.mxu0 0.0
    %228 = vmatprep.subr.mxu0 0.0
    %229 = vmatpush1.msra.mxu0 0.0
    %230 = vmatprep.subr.mxu0 0.0
    %231 = vmatpush1.msra.mxu0 0.0
    %232 = vmatprep.subr.mxu0 0.0
    %233 = vmatpush1.msra.mxu0 0.0
    %234 = vmatprep.subr.mxu0 0.0
    %235 = vmatpush1.msra.mxu0 0.0
    %236 = vmatprep.mubr.f32.mxu0 0.0
    %237 = vmatmul.mubr.f32.gmra.mrb[0].mxu0 %v161
    %v238 = vpop.f32.mrb[0].mxu0
    %v239 = vadd.f32 %v142, %v238
    %v240 = vpop.f32.mrb[0].mxu0
    %241 = vmatprep.mubr.f32.mxu0 0.0
    %242 = vmatmul.mubr.f32.gmra.mrb[0].mxu0 %v164
    %v243 = vpop.f32.mrb[0].mxu0
    %v244 = vadd.f32 %v147, %v243
    %v245 = vpop.f32.mrb[0].mxu0
    %246 = vmatprep.mubr.f32.mxu0 0.0
    %247 = vmatmul.mubr.f32.gmra.mrb[0].mxu0 %v167
    %v248 = vpop.f32.mrb[0].mxu0
    %v249 = vadd.f32 %v152, %v248
    %v250 = vpop.f32.mrb[0].mxu0
    %251 = vmatprep.mubr.f32.mxu0 0.0
    %252 = vmatmul.mubr.f32.gmra.mrb[0].mxu0 %v170
    %v253 = vpop.f32.mrb[0].mxu0
    %v254 = vadd.f32 %v157, %v253
    %v255 = vpop.f32.mrb[0].mxu0
    %256 = vdwg.mxu0
    %v257 = vmax.f32 %v239, 0.0
    %v258 = vmax.f32 %v244, 0.0
    %v259 = vmax.f32 %v249, 0.0
    %v260 = vmax.f32 %v254, 0.0
    %v261 = vld [vmem:[%s5] sm:$0x1]
    %v262 = vld [vmem:[#allocation2] sm:$0x1]
    %264 = vset.pattern.permute.xlu0 0
    %265 = vperm.xlu0 %264, %v262
    %v266 = vpop.permute.xlu0 %265
    %v268 = vlaneseq
    %v269 = vshrl.u32 %v268, 7
    %v270 = vsub.s32 0, %v269
    %v271 = vrot.slane %v266, %v270
    %vm272 = vcmask 261120
    %v274 = vsel %vm272, %v261, 0
    %276 = vmatprep.subr.mxu0 0.0
    %277 = vmatpush1.msra.mxu0 %v257
    %278 = vmatprep.subr.mxu0 0.0
    %279 = vmatpush1.msra.mxu0 %v258
    %280 = vmatprep.subr.mxu0 0.0
    %281 = vmatpush1.msra.mxu0 %v259
    %282 = vmatprep.subr.mxu0 0.0
    %283 = vmatpush1.msra.mxu0 %v260
    %284 = vmatprep.subr.mxu0 0.0
    %285 = vmatpush1.msra.mxu0 0.0
    %286 = vmatprep.subr.mxu0 0.0
    %287 = vmatpush1.msra.mxu0 0.0
    %288 = vmatprep.subr.mxu0 0.0
    %289 = vmatpush1.msra.mxu0 0.0
    %290 = vmatprep.subr.mxu0 0.0
    %291 = vmatpush1.msra.mxu0 0.0
    %292 = vmatprep.subr.mxu0 0.0
    %293 = vmatpush1.msra.mxu0 0.0
    %294 = vmatprep.subr.mxu0 0.0
    %295 = vmatpush1.msra.mxu0 0.0
    %296 = vmatprep.subr.mxu0 0.0
    %297 = vmatpush1.msra.mxu0 0.0
    %298 = vmatprep.subr.mxu0 0.0
    %299 = vmatpush1.msra.mxu0 0.0
    %300 = vmatprep.subr.mxu0 0.0
    %301 = vmatpush1.msra.mxu0 0.0
    %302 = vmatprep.subr.mxu0 0.0
    %303 = vmatpush1.msra.mxu0 0.0
    %304 = vmatprep.subr.mxu0 0.0
    %305 = vmatpush1.msra.mxu0 0.0
    %306 = vmatprep.subr.mxu0 0.0
    %307 = vmatpush1.msra.mxu0 0.0
    %308 = vmatprep.subr.mxu0 0.0
    %309 = vmatpush1.msra.mxu0 0.0
    %310 = vmatprep.subr.mxu0 0.0
    %311 = vmatpush1.msra.mxu0 0.0
    %312 = vmatprep.subr.mxu0 0.0
    %313 = vmatpush1.msra.mxu0 0.0
    %314 = vmatprep.subr.mxu0 0.0
    %315 = vmatpush1.msra.mxu0 0.0
    %316 = vmatprep.subr.mxu0 0.0
    %317 = vmatpush1.msra.mxu0 0.0
    %318 = vmatprep.subr.mxu0 0.0
    %319 = vmatpush1.msra.mxu0 0.0
    %320 = vmatprep.subr.mxu0 0.0
    %321 = vmatpush1.msra.mxu0 0.0
    %322 = vmatprep.subr.mxu0 0.0
    %323 = vmatpush1.msra.mxu0 0.0
    %324 = vmatprep.subr.mxu0 0.0
    %325 = vmatpush1.msra.mxu0 0.0
    %326 = vmatprep.subr.mxu0 0.0
    %327 = vmatpush1.msra.mxu0 0.0
    %328 = vmatprep.subr.mxu0 0.0
    %329 = vmatpush1.msra.mxu0 0.0
    %330 = vmatprep.subr.mxu0 0.0
    %331 = vmatpush1.msra.mxu0 0.0
    %332 = vmatprep.subr.mxu0 0.0
    %333 = vmatpush1.msra.mxu0 0.0
    %334 = vmatprep.subr.mxu0 0.0
    %335 = vmatpush1.msra.mxu0 0.0
    %336 = vmatprep.subr.mxu0 0.0
    %337 = vmatpush1.msra.mxu0 0.0
    %338 = vmatprep.subr.mxu0 0.0
    %339 = vmatpush1.msra.mxu0 0.0
    %340 = vmatprep.mubr.f32.mxu0 0.0
    %341 = vmatmul.mubr.f32.gmra.mrb[0].mxu0 %v274
    %v342 = vpop.f32.mrb[0].mxu0
    %v343 = vadd.f32 %v271, %v342
    %v344 = vpop.f32.mrb[0].mxu0
    %345 = vdwg.mxu0
    %vm346 = vcmask 57344
    %347 = vst.msk [vmem:[#allocation3] sm:$0x1] %vm346, %v343
    // Predicated region
    $region30: #{tpu_custom_call.1} parent=1 // pred_check
      _
    $region31: #{tpu_custom_call.1} parent=1 // pred_check_branch
      %349 = sbr.rel (0) target = $region33
    $region32: #{tpu_custom_call.1} parent=1 // pred_region
      %s351 = ssub.s32 16, 16
      %352 = vsyncadd [#allocation4], %s351
      %s354 = sshll.u32 [#allocation3], 4
      %s355 = int_to_ptr.vmem [resolvable:$true] %s354
      %357 = dma.vmem_to_hbm [thread:$0]  %s355, 16, %s7, [#allocation4]
    $region33: #{tpu_custom_call.1} parent=1 // pred_fallthru
      _
    // Predicated region
    $region34: #{tpu_custom_call.1} parent=1 // pred_check
      _
    $region35: #{tpu_custom_call.1} parent=1 // pred_check_branch
      %359 = sbr.rel (0) target = $region37
    $region36: #{tpu_custom_call.1} parent=1 // pred_region
      %360 = dma.done [#allocation4], 16
    $region37: #{tpu_custom_call.1} parent=1 // pred_fallthru
      _
    %361 = vsyncpa [#allocation4], 1

</llo_original>
